<compile_context>
chip_gen: v6e
topology: v6e:2x2x1
jax: 0.10.0
libtpu: 0.0.40
codegen_flags: <defaults>
</compile_context>

<pallas_src>
import functools

import numpy as np
import jax
import jax.numpy as jnp
from jax import lax
from jax.experimental import pallas as pl
from jax.experimental.pallas import tpu as pltpu

_NEG_BIG = -1e30  # finite "-inf" so padded columns never produce inf-inf NaNs


def _round_up(x, m):
    return (x + m - 1) // m * m


def _pad_to(arr, shape):
    pads = [(0, t - s) for s, t in zip(arr.shape, shape)]
    if all(p == (0, 0) for p in pads):
        return arr
    return jnp.pad(arr, pads)


# --------------------------- fused small-M kernel ---------------------------
def _fused_kernel(q_ref, p_ref, w1_ref, b1_ref, w2_ref, b2_ref, bias_ref, out_ref, *, scale):
    # zq = (q @ W1 + b1) * scale   (scale folded here: M*D mults, not M*M)
    zq = (jnp.dot(q_ref[...], w1_ref[...], preferred_element_type=jnp.float32)
          + b1_ref[...]) * scale
    zp = (jnp.dot(p_ref[...], w2_ref[...], preferred_element_type=jnp.float32)
          + b2_ref[...])
    # logits: contract last dims (no transpose materialized).
    logits = lax.dot_general(zq, zp, dimension_numbers=(((1,), (1,)), ((), ())),
                             preferred_element_type=jnp.float32)
    logits = logits + bias_ref[...]          # additive column mask (zeros when no padding)
    diag = jnp.sum(zq * zp, axis=-1, keepdims=True)     # label logit, directly
    mx = jnp.max(logits, axis=-1, keepdims=True)
    lse = mx + jnp.log(jnp.sum(jnp.exp(logits - mx), axis=-1, keepdims=True))
    out_ref[...] = lse - diag                # padded rows are sliced off in the wrapper


# ----------------------- tiled pass 1: projections --------------------------
def _project_kernel(q_ref, p_ref, w1_ref, b1_ref, w2_ref, b2_ref, zq_ref, zp_ref, *, scale):
    zq = jnp.dot(q_ref[...], w1_ref[...], preferred_element_type=jnp.float32) + b1_ref[...]
    zq_ref[...] = zq * scale
    zp_ref[...] = (
        jnp.dot(p_ref[...], w2_ref[...], preferred_element_type=jnp.float32) + b2_ref[...]
    )
    # TODO(synk): optionally emit zq/zp as bf16 (halves inter-pass HBM/VMEM, full-rate
    # bf16 MXU on v6e/v7x) at ~1e-3 accuracy; kept f32 to preserve the 1e-4 check.


# ---------------- tiled pass 2: online-softmax cross-entropy ----------------
def _loss_tiled_kernel(zq_ref, zp_ref, bias_ref, out_ref, m_sc, l_sc, d_sc):
    i = pl.program_id(0)          # query-row tile (parallel)
    j = pl.program_id(1)          # negative-column tile (reduction axis, innermost)

    @pl.when(j == 0)
    def _():
        m_sc[...] = jnp.full(m_sc.shape, _NEG_BIG, m_sc.dtype)
        l_sc[...] = jnp.zeros(l_sc.shape, l_sc.dtype)

    zq = zq_ref[...]              # (TM, Dp), already scaled by 1/sqrt(middle_dim)
    zp = zp_ref[...]              # (TM, Dp), column tile j
    logits = lax.dot_general(zq, zp, dimension_numbers=(((1,), (1,)), ((), ())),
                             preferred_element_type=jnp.float32)
    logits = logits + bias_ref[...]          # 0 for real columns, -1e30 for padded ones

    # Diagonal (label logit) lives in the j == i column tile; capture it once.
    @pl.when(j == i)
    def _():
        d_sc[...] = jnp.sum(zq * zp, axis=-1, keepdims=True)

    # Online (flash-style) logsumexp: VMEM footprint independent of M.
    m_prev = m_sc[...]
    m_new = jnp.maximum(m_prev, jnp.max(logits, axis=-1, keepdims=True))
    l_sc[...] = (jnp.exp(m_prev - m_new) * l_sc[...]
                 + jnp.sum(jnp.exp(logits - m_new), axis=-1, keepdims=True))
    m_sc[...] = m_new

    @pl.when(j == pl.num_programs(1) - 1)
    def _():
        out_ref[...] = m_sc[...] + jnp.log(l_sc[...]) - d_sc[...]


def infonce_pallas(q, p, w1_t, b1, w2_t, b2, middle_dim, *, tm_target=128):
    """q: (M, dim1), p: (M, dim2), w1_t: (dim1, D), w2_t: (dim2, D), b1/b2: (1, D)."""
    q = jnp.asarray(q, jnp.float32)
    p = jnp.asarray(p, jnp.float32)
    w1_t = jnp.asarray(w1_t, jnp.float32)
    w2_t = jnp.asarray(w2_t, jnp.float32)
    b1 = jnp.asarray(b1, jnp.float32).reshape(1, -1)
    b2 = jnp.asarray(b2, jnp.float32).reshape(1, -1)

    M, C1 = q.shape
    _, C2 = p.shape
    D = w1_t.shape[1]
    Dp = _round_up(max(D, 1), 128)          # lane-dense middle dim
    scale = 1.0 / float(middle_dim) ** 0.5

    w1p = _pad_to(w1_t, (C1, Dp))
    w2p = _pad_to(w2_t, (C2, Dp))
    b1p = _pad_to(b1, (1, Dp))
    b2p = _pad_to(b2, (1, Dp))

    if M <= tm_target:
        # ------------- fused single-launch path (shipped config) -------------
        M_pad = _round_up(M, 8)
        q_p = _pad_to(q, (M_pad, C1))
        p_p = _pad_to(p, (M_pad, C2))
        col_bias = jnp.where(jnp.arange(M_pad) < M, 0.0, _NEG_BIG
                             ).astype(jnp.float32).reshape(1, M_pad)
        cost = pl.CostEstimate(
            flops=int(2 * M_pad * Dp * (C1 + C2) + 2 * M_pad * M_pad * Dp + 2 * M_pad * Dp),
            transcendentals=int(M_pad * M_pad + M_pad),
            bytes_accessed=int(4 * (M_pad * (C1 + C2) + (C1 + C2) * Dp + 2 * Dp + 2 * M_pad)),
        )
        row_loss = pl.pallas_call(
            functools.partial(_fused_kernel, scale=scale),
            out_shape=jax.ShapeDtypeStruct((M_pad, 1), jnp.float32),
            cost_estimate=cost,
        )(q_p, p_p, w1p, b1p, w2p, b2p, col_bias)
        return jnp.sum(row_loss[:M, 0])

    # ------- tiled path: pass 1 (projection) + pass 2 (online-softmax CE) -------
    # TM = 128 is v7x-safe; raise tm_target to 256-512 on v5e/v6e for very large M.
    TM = _round_up(tm_target, 128)          # bias column block needs a multiple of 128
    M_pad = _round_up(M, TM)
    num_tiles = M_pad // TM
    q_p = _pad_to(q, (M_pad, C1))
    p_p = _pad_to(p, (M_pad, C2))

    cost1 = pl.CostEstimate(
        flops=int(2 * M_pad * Dp * (C1 + C2)),
        transcendentals=0,
        bytes_accessed=int(4 * (M_pad * (C1 + C2) + (C1 + C2) * Dp + 2 * Dp + 2 * M_pad * Dp)),
    )
    zq, zp = pl.pallas_call(
        functools.partial(_project_kernel, scale=scale),
        grid=(num_tiles,),
        in_specs=[
            pl.BlockSpec((TM, C1), lambda i: (i, 0)),
            pl.BlockSpec((TM, C2), lambda i: (i, 0)),
            pl.BlockSpec((C1, Dp), lambda i: (0, 0)),
            pl.BlockSpec((1, Dp), lambda i: (0, 0)),
            pl.BlockSpec((C2, Dp), lambda i: (0, 0)),
            pl.BlockSpec((1, Dp), lambda i: (0, 0)),
        ],
        out_specs=[
            pl.BlockSpec((TM, Dp), lambda i: (i, 0)),
            pl.BlockSpec((TM, Dp), lambda i: (i, 0)),
        ],
        out_shape=[
            jax.ShapeDtypeStruct((M_pad, Dp), jnp.float32),
            jax.ShapeDtypeStruct((M_pad, Dp), jnp.float32),
        ],
        compiler_params=pltpu.CompilerParams(dimension_semantics=("parallel",)),
        cost_estimate=cost1,
    )(q_p, p_p, w1p, b1p, w2p, b2p)

    col_bias = jnp.where(jnp.arange(M_pad) < M, 0.0, _NEG_BIG
                         ).astype(jnp.float32).reshape(1, M_pad)

    # VMEM per step is O(TM*Dp + TM*TM) — independent of M, well under the default
    # scoped limit on every generation, so no vmem_limit_bytes override is needed.
    cost2 = pl.CostEstimate(
        flops=int(2 * M_pad * M_pad * Dp + 2 * M_pad * Dp),
        transcendentals=int(M_pad * M_pad + M_pad),
        bytes_accessed=int(4 * (M_pad * Dp * (1 + num_tiles) + num_tiles * M_pad + M_pad)),
    )
    row_loss = pl.pallas_call(
        _loss_tiled_kernel,
        grid=(num_tiles, num_tiles),
        in_specs=[
            pl.BlockSpec((TM, Dp), lambda i, j: (i, 0)),   # zq row tile (held across j)
            pl.BlockSpec((TM, Dp), lambda i, j: (j, 0)),   # zp column tile
            pl.BlockSpec((1, TM), lambda i, j: (0, j)),    # additive column mask
        ],
        out_specs=pl.BlockSpec((TM, 1), lambda i, j: (i, 0)),
        out_shape=jax.ShapeDtypeStruct((M_pad, 1), jnp.float32),
        scratch_shapes=[
            pltpu.VMEM((TM, 1), jnp.float32),   # running max
            pltpu.VMEM((TM, 1), jnp.float32),   # running sum-exp
            pltpu.VMEM((TM, 1), jnp.float32),   # diagonal (label logit)
        ],
        compiler_params=pltpu.CompilerParams(
            dimension_semantics=("parallel", "arbitrary")),
        cost_estimate=cost2,
    )(zq, zp, col_bias)

    # Tiny final reduction in the wrapper (padded rows dropped here).
    return jnp.sum(row_loss[:M, 0])


def infonce_reference(q, p, w1_t, b1, w2_t, b2, middle_dim):
    zq = q @ w1_t + b1
    zp = p @ w2_t + b2
    logits = (zq @ zp.T) / float(middle_dim) ** 0.5
    lse = jax.scipy.special.logsumexp(logits, axis=-1)
    diag = jnp.diagonal(logits)
    return jnp.sum(lse - diag)


if __name__ == "__main__":
    # Hparams-equivalent configuration (small, deterministic)
    B, T = 2, 8
    dim1, dim2 = 32, 24
    middle_dim = 16          # hp.dim
    num_negatives = 8        # hp.num_negatives

    key = jax.random.PRNGKey(0)
    k_q, k_p, k_w1, k_b1, k_w2, k_b2, k_perm, k_big = jax.random.split(key, 8)

    # TensorMask inputs: values (B, T, C), boolean mask (B, T)
    q_val = jax.random.normal(k_q, (B, T, dim1), dtype=jnp.float32)
    p_val = jax.random.normal(k_p, (B, T, dim2), dtype=jnp.float32)
    # Deterministic mask: first 6 timesteps of each batch are valid -> N = 12 tokens
    mask = (jnp.arange(T)[None, :] < 6).repeat(B, axis=0)  # (B, T) bool

    # --- glue: masked selection (q.value[mask]) done host-side with numpy ---
    # TODO(synk): data-dependent masked select / randperm subsampling stay outside the kernel.
    mask_np = np.asarray(mask).reshape(-1)
    q_flat = np.asarray(q_val).reshape(B * T, dim1)[mask_np]   # (N, dim1)
    p_flat = np.asarray(p_val).reshape(B * T, dim2)[mask_np]   # (N, dim2)
    N = q_flat.shape[0]

    # --- glue: random subsampling to num_negatives (torch.randperm equivalent) ---
    perm = np.asarray(jax.random.permutation(k_perm, N))[:num_negatives]
    q_sel = jnp.asarray(q_flat[perm])   # (M, dim1)
    p_sel = jnp.asarray(p_flat[perm])   # (M, dim2)

    # Deterministic parameter init (nn.Linear-style uniform +/- 1/sqrt(fan_in))
    w1 = jax.random.uniform(k_w1, (middle_dim, dim1), jnp.float32,
                            -1.0 / dim1 ** 0.5, 1.0 / dim1 ** 0.5)   # torch layout (out, in)
    b1 = jax.random.uniform(k_b1, (1, middle_dim), jnp.float32,
                            -1.0 / dim1 ** 0.5, 1.0 / dim1 ** 0.5)
    w2 = jax.random.uniform(k_w2, (middle_dim, dim2), jnp.float32,
                            -1.0 / dim2 ** 0.5, 1.0 / dim2 ** 0.5)
    b2 = jax.random.uniform(k_b2, (1, middle_dim), jnp.float32,
                            -1.0 / dim2 ** 0.5, 1.0 / dim2 ** 0.5)

    # Pass weights pre-transposed to (in, out) for the kernel
    w1_t = w1.T
    w2_t = w2.T

    # ---- shipped config (M = num_negatives = 8): fused single-launch path ----
    loss = infonce_pallas(q_sel, p_sel, w1_t, b1, w2_t, b2, middle_dim)
    loss = jax.block_until_ready(loss)
    ref = infonce_reference(q_sel, p_sel, w1_t, b1, w2_t, b2, middle_dim)
    assert np.allclose(np.asarray(loss), np.asarray(ref), rtol=1e-4, atol=1e-4), (loss, ref)

    # ---- larger M exercises the tiled / online-softmax path (incl. padding) ----
    M_big = 300
    kq2, kp2 = jax.random.split(k_big)
    q_big = jax.random.normal(kq2, (M_big, dim1), dtype=jnp.float32)
    p_big = jax.random.normal(kp2, (M_big, dim2), dtype=jnp.float32)
    loss_big = infonce_pallas(q_big, p_big, w1_t, b1, w2_t, b2, middle_dim)
    loss_big = jax.block_until_ready(loss_big)
    ref_big = infonce_reference(q_big, p_big, w1_t, b1, w2_t, b2, middle_dim)
    assert np.allclose(np.asarray(loss_big), np.asarray(ref_big),
                       rtol=5e-3, atol=1e-2), (loss_big, ref_big)

    print("KERNEL_OK")
</pallas_src>

<mosaic_0001>
module attributes {stable_mosaic.version = 11 : i64} {
  func.func @_fused_kernel(%arg0: memref<8x32xf32, #tpu.memory_space<vmem>>, %arg1: memref<8x24xf32, #tpu.memory_space<vmem>>, %arg2: memref<32x128xf32, #tpu.memory_space<vmem>>, %arg3: memref<1x128xf32, #tpu.memory_space<vmem>>, %arg4: memref<24x128xf32, #tpu.memory_space<vmem>>, %arg5: memref<1x128xf32, #tpu.memory_space<vmem>>, %arg6: memref<1x8xf32, #tpu.memory_space<vmem>>, %arg7: memref<8x1xf32, #tpu.memory_space<vmem>>) attributes {dimension_semantics = [], scalar_prefetch = 0 : i64, scratch_operands = 0 : i64, tpu.core_type = #tpu.core_type<tc>} {
    %c0 = arith.constant 0 : index
    %c0_0 = arith.constant 0 : index
    %0 = vector.load %arg0[%c0, %c0_0] : memref<8x32xf32, #tpu.memory_space<vmem>>, vector<8x32xf32>
    %c0_1 = arith.constant 0 : index
    %c0_2 = arith.constant 0 : index
    %1 = vector.load %arg2[%c0_1, %c0_2] : memref<32x128xf32, #tpu.memory_space<vmem>>, vector<32x128xf32>
    %cst = arith.constant dense<0.000000e+00> : vector<8x128xf32>
    %2 = tpu.matmul %0, %1, %cst {dimension_numbers = #tpu.dot_dimension_numbers<[1], [0], [0], [1], [0, 0, 1, 1], [], []>} : vector<8x32xf32>, vector<32x128xf32>, vector<8x128xf32> -> vector<8x128xf32>
    %c0_3 = arith.constant 0 : index
    %c0_4 = arith.constant 0 : index
    %3 = vector.load %arg3[%c0_3, %c0_4] : memref<1x128xf32, #tpu.memory_space<vmem>>, vector<1x128xf32>
    %4 = vector.broadcast %3 : vector<1x128xf32> to vector<8x128xf32>
    %5 = arith.addf %2, %4 : vector<8x128xf32>
    %cst_5 = arith.constant 2.500000e-01 : f32
    %6 = vector.broadcast %cst_5 : f32 to vector<8x128xf32>
    %7 = arith.mulf %5, %6 : vector<8x128xf32>
    %c0_6 = arith.constant 0 : index
    %c0_7 = arith.constant 0 : index
    %8 = vector.load %arg1[%c0_6, %c0_7] : memref<8x24xf32, #tpu.memory_space<vmem>>, vector<8x24xf32>
    %c0_8 = arith.constant 0 : index
    %c0_9 = arith.constant 0 : index
    %9 = vector.load %arg4[%c0_8, %c0_9] : memref<24x128xf32, #tpu.memory_space<vmem>>, vector<24x128xf32>
    %cst_10 = arith.constant dense<0.000000e+00> : vector<8x128xf32>
    %10 = tpu.matmul %8, %9, %cst_10 {dimension_numbers = #tpu.dot_dimension_numbers<[1], [0], [0], [1], [0, 0, 1, 1], [], []>} : vector<8x24xf32>, vector<24x128xf32>, vector<8x128xf32> -> vector<8x128xf32>
    %c0_11 = arith.constant 0 : index
    %c0_12 = arith.constant 0 : index
    %11 = vector.load %arg5[%c0_11, %c0_12] : memref<1x128xf32, #tpu.memory_space<vmem>>, vector<1x128xf32>
    %12 = vector.broadcast %11 : vector<1x128xf32> to vector<8x128xf32>
    %13 = arith.addf %10, %12 : vector<8x128xf32>
    %cst_13 = arith.constant dense<0.000000e+00> : vector<8x8xf32>
    %14 = tpu.matmul %7, %13, %cst_13 {dimension_numbers = #tpu.dot_dimension_numbers<[1], [1], [0], [0], [0, 0, 1, 0], [], []>} : vector<8x128xf32>, vector<8x128xf32>, vector<8x8xf32> -> vector<8x8xf32>
    %c0_14 = arith.constant 0 : index
    %c0_15 = arith.constant 0 : index
    %15 = vector.load %arg6[%c0_14, %c0_15] : memref<1x8xf32, #tpu.memory_space<vmem>>, vector<1x8xf32>
    %16 = vector.broadcast %15 : vector<1x8xf32> to vector<8x8xf32>
    %17 = arith.addf %14, %16 : vector<8x8xf32>
    %18 = arith.mulf %7, %13 : vector<8x128xf32>
    %cst_16 = arith.constant dense<0.000000e+00> : vector<8xf32>
    %19 = vector.multi_reduction <add>, %18, %cst_16 [1] : vector<8x128xf32> to vector<8xf32>
    %20 = vector.shape_cast %19 : vector<8xf32> to vector<8x1xf32>
    %cst_17 = arith.constant dense<0xFF800000> : vector<8xf32>
    %21 = vector.multi_reduction <maximumf>, %17, %cst_17 [1] : vector<8x8xf32> to vector<8xf32>
    %22 = vector.shape_cast %21 : vector<8xf32> to vector<8x1xf32>
    %23 = vector.broadcast %22 : vector<8x1xf32> to vector<8x8xf32>
    %24 = arith.subf %17, %23 : vector<8x8xf32>
    %25 = math.exp %24 : vector<8x8xf32>
    %cst_18 = arith.constant dense<0.000000e+00> : vector<8xf32>
    %26 = vector.multi_reduction <add>, %25, %cst_18 [1] : vector<8x8xf32> to vector<8xf32>
    %27 = vector.shape_cast %26 : vector<8xf32> to vector<8x1xf32>
    %28 = math.log %27 : vector<8x1xf32>
    %29 = arith.addf %22, %28 : vector<8x1xf32>
    %30 = arith.subf %29, %20 : vector<8x1xf32>
    %c0_19 = arith.constant 0 : index
    %c0_20 = arith.constant 0 : index
    %31 = vector.load %arg7[%c0_19, %c0_20] : memref<8x1xf32, #tpu.memory_space<vmem>>, vector<8x1xf32>
    tpu.vector_store %arg7[%c0_19, %c0_20], %30 {strides = array<i32>} : memref<8x1xf32, #tpu.memory_space<vmem>>, vector<8x1xf32>,
    return
  }
}

</mosaic_0001>

<llo_original>
// kernel: tpu_custom_call.1
$region0: #{tpu_custom_call.1}
  #allocation0 [shape = 'u32[]', space=smem, size = 0x4, offset = 0x4, fixed_abs, tag = 'smem constant byte address 0x4 - core index']
  #allocation1 [shape = 'u32[144,128]{1,0:T(1,128)}', space=vmem, size = 0x12000, scoped, tag = 'internal scratch']
  %s0 = inlined_call_operand.hbm [shape: f32[8,32], index: 0, kind: input, shape index: {}]
  %s1 = inlined_call_operand.hbm [shape: f32[8,24], index: 1, kind: input, shape index: {}]
  %s2 = inlined_call_operand.hbm [shape: f32[32,128], index: 2, kind: input, shape index: {}]
  %s3 = inlined_call_operand.vmem [shape: f32[1,128], index: 3, kind: input, shape index: {}]
  %s4 = inlined_call_operand.hbm [shape: f32[24,128], index: 4, kind: input, shape index: {}]
  %s5 = inlined_call_operand.vmem [shape: f32[1,128], index: 5, kind: input, shape index: {}]
  %s6 = inlined_call_operand.vmem [shape: f32[1,8], index: 6, kind: input, shape index: {}]
  %s7 = inlined_call_operand.vmem [shape: f32[8,1], index: 7, kind: output, shape index: {}]
  %s8 = sld [smem:[#allocation0]]
  $region54: #{tpu_custom_call.1} parent=0
    _
  %s10 = ssub.s32 1, %s8
  %s11 = scalar_select 0, %s10, %s8
  $region1: #{tpu_custom_call.1} parent=0
    #allocation2 [shape = 'u8[4096]{0}', space=vmem, size = 0x1000, scoped, tag = 'input window, operand 0, single buffered']
    #allocation3 [shape = 's32[1]{0}', space=sflag, size = 0x4, scoped, tag = 'scoped memory for tpu_custom_call.1']
    #allocation4 [shape = 'u8[4096]{0}', space=vmem, size = 0x1000, scoped, tag = 'input window, operand 1, single buffered']
    #allocation5 [shape = 's32[1]{0}', space=sflag, size = 0x4, scoped, tag = 'scoped memory for tpu_custom_call.1']
    #allocation6 [shape = 'u8[16384]{0}', space=vmem, size = 0x4000, scoped, tag = 'input window, operand 2, single buffered']
    #allocation7 [shape = 'u8[12288]{0}', space=vmem, size = 0x3000, scoped, tag = 'input window, operand 4, single buffered']
    #allocation8 [shape = 's32[1]{0}', space=sflag, size = 0x4, scoped, tag = 'scoped memory for tpu_custom_call.1']
    %12 = vsyncpa [#allocation3], 0
    %13 = vsyncpa [#allocation5], 0
    %14 = vsyncpa [#allocation8], 0
    // Predicated region
    $region2: #{tpu_custom_call.1} parent=1 // pred_check
      _
    $region3: #{tpu_custom_call.1} parent=1 // pred_check_branch
      %16 = sbr.rel (0) target = $region5
    $region4: #{tpu_custom_call.1} parent=1 // pred_region
      %s18 = ssub.s32 128, 128
      %19 = vsyncadd [#allocation3], %s18
      %s21 = sshll.u32 [#allocation2], 4
      %s22 = int_to_ptr.vmem [resolvable:$true] %s21
      %24 = dma.hbm_to_vmem [thread:$0]  %s0, 128, %s22, [#allocation3]
    $region5: #{tpu_custom_call.1} parent=1 // pred_fallthru
      _
    // Predicated region
    $region6: #{tpu_custom_call.1} parent=1 // pred_check
      _
    $region7: #{tpu_custom_call.1} parent=1 // pred_check_branch
      %26 = sbr.rel (0) target = $region9
    $region8: #{tpu_custom_call.1} parent=1 // pred_region
      %s28 = ssub.s32 128, 128
      %29 = vsyncadd [#allocation5], %s28
      %s31 = sshll.u32 [#allocation4], 4
      %s32 = int_to_ptr.vmem [resolvable:$true] %s31
      %34 = dma.hbm_to_vmem [thread:$0]  %s1, 128, %s32, [#allocation5]
    $region9: #{tpu_custom_call.1} parent=1 // pred_fallthru
      _
    // Predicated region
    $region10: #{tpu_custom_call.1} parent=1 // pred_check
      _
    $region11: #{tpu_custom_call.1} parent=1 // pred_check_branch
      %36 = sbr.rel (0) target = $region13
    $region12: #{tpu_custom_call.1} parent=1 // pred_region
      %s38 = ssub.s32 512, 512
      %39 = vsyncadd [#allocation5], %s38
      %s40 = sshll.u32 [#allocation6], 4
      %s41 = int_to_ptr.vmem [resolvable:$true] %s40
      %46 = dma.hbm_to_vmem [thread:$0]  %s2, 512, %s41, [#allocation5], 128, 128, 8
    $region13: #{tpu_custom_call.1} parent=1 // pred_fallthru
      _
    // Predicated region
    $region14: #{tpu_custom_call.1} parent=1 // pred_check
      _
    $region15: #{tpu_custom_call.1} parent=1 // pred_check_branch
      %48 = sbr.rel (0) target = $region17
    $region16: #{tpu_custom_call.1} parent=1 // pred_region
      _
    $region17: #{tpu_custom_call.1} parent=1 // pred_fallthru
      _
    // Predicated region
    $region18: #{tpu_custom_call.1} parent=1 // pred_check
      _
    $region19: #{tpu_custom_call.1} parent=1 // pred_check_branch
      %50 = sbr.rel (0) target = $region21
    $region20: #{tpu_custom_call.1} parent=1 // pred_region
      %s52 = ssub.s32 384, 384
      %53 = vsyncadd [#allocation8], %s52
      %s54 = sshll.u32 [#allocation7], 4
      %s55 = int_to_ptr.vmem [resolvable:$true] %s54
      %60 = dma.hbm_to_vmem [thread:$0]  %s4, 384, %s55, [#allocation8], 128, 128, 8
    $region21: #{tpu_custom_call.1} parent=1 // pred_fallthru
      _
    // Predicated region
    $region22: #{tpu_custom_call.1} parent=1 // pred_check
      _
    $region23: #{tpu_custom_call.1} parent=1 // pred_check_branch
      %62 = sbr.rel (0) target = $region25
    $region24: #{tpu_custom_call.1} parent=1 // pred_region
      _
    $region25: #{tpu_custom_call.1} parent=1 // pred_fallthru
      _
    // Predicated region
    $region26: #{tpu_custom_call.1} parent=1 // pred_check
      _
    $region27: #{tpu_custom_call.1} parent=1 // pred_check_branch
      %64 = sbr.rel (0) target = $region29
    $region28: #{tpu_custom_call.1} parent=1 // pred_region
      _
    $region29: #{tpu_custom_call.1} parent=1 // pred_fallthru
      _
    // Predicated region
    $region30: #{tpu_custom_call.1} parent=1 // pred_check
      _
    $region31: #{tpu_custom_call.1} parent=1 // pred_check_branch
      %66 = sbr.rel (0) target = $region33
    $region32: #{tpu_custom_call.1} parent=1 // pred_region
      %67 = dma.done [#allocation3], 128
    $region33: #{tpu_custom_call.1} parent=1 // pred_fallthru
      _
    // Predicated region
    $region34: #{tpu_custom_call.1} parent=1 // pred_check
      _
    $region35: #{tpu_custom_call.1} parent=1 // pred_check_branch
      %69 = sbr.rel (0) target = $region37
    $region36: #{tpu_custom_call.1} parent=1 // pred_region
      %70 = dma.done [#allocation5], 128
    $region37: #{tpu_custom_call.1} parent=1 // pred_fallthru
      _
    // Predicated region
    $region38: #{tpu_custom_call.1} parent=1 // pred_check
      _
    $region39: #{tpu_custom_call.1} parent=1 // pred_check_branch
      %72 = sbr.rel (0) target = $region41
    $region40: #{tpu_custom_call.1} parent=1 // pred_region
      %73 = dma.done [#allocation5], 512
    $region41: #{tpu_custom_call.1} parent=1 // pred_fallthru
      _
    // Predicated region
    $region42: #{tpu_custom_call.1} parent=1 // pred_check
      _
    $region43: #{tpu_custom_call.1} parent=1 // pred_check_branch
      %75 = sbr.rel (0) target = $region45
    $region44: #{tpu_custom_call.1} parent=1 // pred_region
      %76 = dma.done [#allocation8], 384
    $region45: #{tpu_custom_call.1} parent=1 // pred_fallthru
      _
    %v77 = vld [vmem:[#allocation2] sm:$0xff]
    %v78 = vld [vmem:[#allocation6] sm:$0xff]
    %v79 = vld [vmem:[#allocation6 + $0x8] sm:$0xff]
    %v80 = vld [vmem:[#allocation6 + $0x10] sm:$0xff]
    %v81 = vld [vmem:[#allocation6 + $0x18] sm:$0xff]
    %v82 = vld [vmem:[%s3] sm:$0x1]
    %v84 = vlaneseq
    %v85 = vshrl.u32 %v84, 7
    %v86 = vsub.s32 0, %v85
    %v87 = vrot.slane %v82, %v86
    %vm89 = vcmask 261120
    %v91 = vsel %vm89, %v77, 0
    %93 = vmatprep.subr.mxu0 0.0
    %94 = vmatpush1.msra.mxu0 0.0
    %95 = vmatprep.subr.mxu0 0.0
    %96 = vmatpush1.msra.mxu0 0.0
    %97 = vmatprep.subr.mxu0 0.0
    %98 = vmatpush1.msra.mxu0 0.0
    %99 = vmatprep.subr.mxu0 0.0
    %100 = vmatpush1.msra.mxu0 0.0
    %101 = vmatprep.subr.mxu0 0.0
    %102 = vmatpush1.msra.mxu0 0.0
    %103 = vmatprep.subr.mxu0 0.0
    %104 = vmatpush1.msra.mxu0 0.0
    %105 = vmatprep.subr.mxu0 0.0
    %106 = vmatpush1.msra.mxu0 0.0
    %107 = vmatprep.subr.mxu0 0.0
    %108 = vmatpush1.msra.mxu0 0.0
    %109 = vmatprep.subr.mxu0 0.0
    %110 = vmatpush1.msra.mxu0 0.0
    %111 = vmatprep.subr.mxu0 0.0
    %112 = vmatpush1.msra.mxu0 0.0
    %113 = vmatprep.subr.mxu0 0.0
    %114 = vmatpush1.msra.mxu0 0.0
    %115 = vmatprep.subr.mxu0 0.0
    %116 = vmatpush1.msra.mxu0 0.0
    %117 = vmatprep.subr.mxu0 0.0
    %118 = vmatpush1.msra.mxu0 %v81
    %119 = vmatprep.subr.mxu0 0.0
    %120 = vmatpush1.msra.mxu0 %v80
    %121 = vmatprep.subr.mxu0 0.0
    %122 = vmatpush1.msra.mxu0 %v79
    %123 = vmatprep.subr.mxu0 0.0
    %124 = vmatpush1.msra.mxu0 %v78
    %125 = vmatprep.subr.mxu0 0.0
    %126 = vmatpush2.msra.mxu0 0.0
    %127 = vmatprep.subr.mxu0 0.0
    %128 = vmatpush2.msra.mxu0 0.0
    %129 = vmatprep.subr.mxu0 0.0
    %130 = vmatpush2.msra.mxu0 0.0
    %131 = vmatprep.subr.mxu0 0.0
    %132 = vmatpush2.msra.mxu0 0.0
    %133 = vmatprep.subr.mxu0 0.0
    %134 = vmatpush2.msra.mxu0 0.0
    %135 = vmatprep.subr.mxu0 0.0
    %136 = vmatpush2.msra.mxu0 0.0
    %137 = vmatprep.subr.mxu0 0.0
    %138 = vmatpush2.msra.mxu0 0.0
    %139 = vmatprep.subr.mxu0 0.0
    %140 = vmatpush2.msra.mxu0 0.0
    %141 = vmatprep.subr.mxu0 0.0
    %142 = vmatpush2.msra.mxu0 0.0
    %143 = vmatprep.subr.mxu0 0.0
    %144 = vmatpush2.msra.mxu0 0.0
    %145 = vmatprep.subr.mxu0 0.0
    %146 = vmatpush2.msra.mxu0 0.0
    %147 = vmatprep.subr.mxu0 0.0
    %148 = vmatpush2.msra.mxu0 0.0
    %149 = vmatprep.subr.mxu0 0.0
    %150 = vmatpush2.msra.mxu0 0.0
    %151 = vmatprep.subr.mxu0 0.0
    %152 = vmatpush2.msra.mxu0 0.0
    %153 = vmatprep.subr.mxu0 0.0
    %154 = vmatpush2.msra.mxu0 0.0
    %155 = vmatprep.subr.mxu0 0.0
    %156 = vmatpush2.msra.mxu0 0.0
    %157 = vmatprep.mubr.f32.mxu0 0.0
    %158 = vmatmul.mubr.f32.gmra.mxu0 %v91
    %v159 = vpop.f32.mrf.mxu0
    %v160 = vadd.f32 %v87, %v159
    %v161 = vpop.f32.mrf.mxu0
    %162 = vdwg.mxu0
    %v163 = vmul.f32 %v160, 0.25
    %v164 = vld [vmem:[#allocation4] sm:$0xff]
    %v165 = vld [vmem:[#allocation7] sm:$0xff]
    %v166 = vld [vmem:[#allocation7 + $0x8] sm:$0xff]
    %v167 = vld [vmem:[#allocation7 + $0x10] sm:$0xff]
    %v168 = vld [vmem:[%s5] sm:$0x1]
    %v170 = vlaneseq
    %v171 = vshrl.u32 %v170, 7
    %v172 = vsub.s32 0, %v171
    %v173 = vrot.slane %v168, %v172
    %vm175 = vcmask 195584
    %v177 = vsel %vm175, %v164, 0
    %179 = vmatprep.subr.mxu0 0.0
    %180 = vmatpush1.msra.mxu0 0.0
    %181 = vmatprep.subr.mxu0 0.0
    %182 = vmatpush1.msra.mxu0 0.0
    %183 = vmatprep.subr.mxu0 0.0
    %184 = vmatpush1.msra.mxu0 0.0
    %185 = vmatprep.subr.mxu0 0.0
    %186 = vmatpush1.msra.mxu0 0.0
    %187 = vmatprep.subr.mxu0 0.0
    %188 = vmatpush1.msra.mxu0 0.0
    %189 = vmatprep.subr.mxu0 0.0
    %190 = vmatpush1.msra.mxu0 0.0
    %191 = vmatprep.subr.mxu0 0.0
    %192 = vmatpush1.msra.mxu0 0.0
    %193 = vmatprep.subr.mxu0 0.0
    %194 = vmatpush1.msra.mxu0 0.0
    %195 = vmatprep.subr.mxu0 0.0
    %196 = vmatpush1.msra.mxu0 0.0
    %197 = vmatprep.subr.mxu0 0.0
    %198 = vmatpush1.msra.mxu0 0.0
    %199 = vmatprep.subr.mxu0 0.0
    %200 = vmatpush1.msra.mxu0 0.0
    %201 = vmatprep.subr.mxu0 0.0
    %202 = vmatpush1.msra.mxu0 0.0
    %203 = vmatprep.subr.mxu0 0.0
    %204 = vmatpush1.msra.mxu0 0.0
    %205 = vmatprep.subr.mxu0 0.0
    %206 = vmatpush1.msra.mxu0 %v167
    %207 = vmatprep.subr.mxu0 0.0
    %208 = vmatpush1.msra.mxu0 %v166
    %209 = vmatprep.subr.mxu0 0.0
    %210 = vmatpush1.msra.mxu0 %v165
    %211 = vmatprep.subr.mxu0 0.0
    %212 = vmatpush2.msra.mxu0 0.0
    %213 = vmatprep.subr.mxu0 0.0
    %214 = vmatpush2.msra.mxu0 0.0
    %215 = vmatprep.subr.mxu0 0.0
    %216 = vmatpush2.msra.mxu0 0.0
    %217 = vmatprep.subr.mxu0 0.0
    %218 = vmatpush2.msra.mxu0 0.0
    %219 = vmatprep.subr.mxu0 0.0
    %220 = vmatpush2.msra.mxu0 0.0
    %221 = vmatprep.subr.mxu0 0.0
    %222 = vmatpush2.msra.mxu0 0.0
    %223 = vmatprep.subr.mxu0 0.0
    %224 = vmatpush2.msra.mxu0 0.0
    %225 = vmatprep.subr.mxu0 0.0
    %226 = vmatpush2.msra.mxu0 0.0
    %227 = vmatprep.subr.mxu0 0.0
    %228 = vmatpush2.msra.mxu0 0.0
    %229 = vmatprep.subr.mxu0 0.0
    %230 = vmatpush2.msra.mxu0 0.0
    %231 = vmatprep.subr.mxu0 0.0
    %232 = vmatpush2.msra.mxu0 0.0
    %233 = vmatprep.subr.mxu0 0.0
    %234 = vmatpush2.msra.mxu0 0.0
    %235 = vmatprep.subr.mxu0 0.0
    %236 = vmatpush2.msra.mxu0 0.0
    %237 = vmatprep.subr.mxu0 0.0
    %238 = vmatpush2.msra.mxu0 0.0
    %239 = vmatprep.subr.mxu0 0.0
    %240 = vmatpush2.msra.mxu0 0.0
    %241 = vmatprep.subr.mxu0 0.0
    %242 = vmatpush2.msra.mxu0 0.0
    %243 = vmatprep.mubr.f32.mxu0 0.0
    %244 = vmatmul.mubr.f32.gmra.mxu0 %v177
    %v245 = vpop.f32.mrf.mxu0
    %v246 = vadd.f32 %v173, %v245
    %v247 = vpop.f32.mrf.mxu0
    %248 = vdwg.mxu0
    %v249 = vld [vmem:[%s6] sm:$0x1]
    %v251 = vlaneseq
    %v252 = vshrl.u32 %v251, 7
    %v253 = vsub.s32 0, %v252
    %v254 = vrot.slane %v249, %v253
    %256 = vmatprep.subr.mxu0 0.0
    %257 = vmatpush1.xpose.msra.mxu0 0.0
    %258 = vmatprep.subr.mxu0 0.0
    %259 = vmatpush1.xpose.msra.mxu0 0.0
    %260 = vmatprep.subr.mxu0 0.0
    %261 = vmatpush1.xpose.msra.mxu0 0.0
    %262 = vmatprep.subr.mxu0 0.0
    %263 = vmatpush1.xpose.msra.mxu0 0.0
    %264 = vmatprep.subr.mxu0 0.0
    %265 = vmatpush1.xpose.msra.mxu0 0.0
    %266 = vmatprep.subr.mxu0 0.0
    %267 = vmatpush1.xpose.msra.mxu0 0.0
    %268 = vmatprep.subr.mxu0 0.0
    %269 = vmatpush1.xpose.msra.mxu0 0.0
    %270 = vmatprep.subr.mxu0 0.0
    %271 = vmatpush1.xpose.msra.mxu0 0.0
    %272 = vmatprep.subr.mxu0 0.0
    %273 = vmatpush1.xpose.msra.mxu0 0.0
    %274 = vmatprep.subr.mxu0 0.0
    %275 = vmatpush1.xpose.msra.mxu0 0.0
    %276 = vmatprep.subr.mxu0 0.0
    %277 = vmatpush1.xpose.msra.mxu0 0.0
    %278 = vmatprep.subr.mxu0 0.0
    %279 = vmatpush1.xpose.msra.mxu0 0.0
    %280 = vmatprep.subr.mxu0 0.0
    %281 = vmatpush1.xpose.msra.mxu0 0.0
    %282 = vmatprep.subr.mxu0 0.0
    %283 = vmatpush1.xpose.msra.mxu0 0.0
    %284 = vmatprep.subr.mxu0 0.0
    %285 = vmatpush1.xpose.msra.mxu0 0.0
    %286 = vmatprep.subr.mxu0 0.0
    %287 = vmatpush1.xpose.msra.mxu0 %v246
    %288 = vmatprep.subr.mxu0 0.0
    %289 = vmatpush2.xpose.msra.mxu0 0.0
    %290 = vmatprep.subr.mxu0 0.0
    %291 = vmatpush2.xpose.msra.mxu0 0.0
    %292 = vmatprep.subr.mxu0 0.0
    %293 = vmatpush2.xpose.msra.mxu0 0.0
    %294 = vmatprep.subr.mxu0 0.0
    %295 = vmatpush2.xpose.msra.mxu0 0.0
    %296 = vmatprep.subr.mxu0 0.0
    %297 = vmatpush2.xpose.msra.mxu0 0.0
    %298 = vmatprep.subr.mxu0 0.0
    %299 = vmatpush2.xpose.msra.mxu0 0.0
    %300 = vmatprep.subr.mxu0 0.0
    %301 = vmatpush2.xpose.msra.mxu0 0.0
    %302 = vmatprep.subr.mxu0 0.0
    %303 = vmatpush2.xpose.msra.mxu0 0.0
    %304 = vmatprep.subr.mxu0 0.0
    %305 = vmatpush2.xpose.msra.mxu0 0.0
    %306 = vmatprep.subr.mxu0 0.0
    %307 = vmatpush2.xpose.msra.mxu0 0.0
    %308 = vmatprep.subr.mxu0 0.0
    %309 = vmatpush2.xpose.msra.mxu0 0.0
    %310 = vmatprep.subr.mxu0 0.0
    %311 = vmatpush2.xpose.msra.mxu0 0.0
    %312 = vmatprep.subr.mxu0 0.0
    %313 = vmatpush2.xpose.msra.mxu0 0.0
    %314 = vmatprep.subr.mxu0 0.0
    %315 = vmatpush2.xpose.msra.mxu0 0.0
    %316 = vmatprep.subr.mxu0 0.0
    %317 = vmatpush2.xpose.msra.mxu0 0.0
    %318 = vmatprep.subr.mxu0 0.0
    %319 = vmatpush2.xpose.msra.mxu0 0.0
    %320 = vmatprep.mubr.f32.mxu0 0.0
    %321 = vmatmul.mubr.f32.gmra.mxu0 %v163
    %v322 = vpop.f32.mrf.mxu0
    %v323 = vadd.f32 %v254, %v322
    %v324 = vpop.f32.mrf.mxu0
    %325 = vdwg.mxu0
    %v326 = vmul.f32 %v163, %v246
    %327 = vadd.xlane.f32.xlu0 %v326
    %v328 = vpop.xlane.xlu0 %327
    %vm329 = vcmask 64512
    %v330 = vsel %vm329, %v323, -inf
    %331 = vmax.xlane.f32.xlu0 %v330
    %v332 = vpop.xlane.xlu0 %331
    %v333 = vsub.f32 %v323, %v332
    %v334 = vmul.f32 %v333, 1.442695
    %v335 = vpow.pop %v334
    %v336 = vsel %vm329, %v335, 0.0
    %337 = vadd.xlane.f32.xlu0 %v336
    %v338 = vpop.xlane.xlu0 %337
    %v339 = vlog2.pop %v338
    %v340 = vmul.f32 %v339, 0.6931472
    %v341 = vadd.f32 %v332, %v340
    %v342 = vsub.f32 %v341, %v328
    %vm343 = vcmask 7168
    %344 = vst.msk [vmem:[%s7] sm:$0xff] %vm343, %v342
    // Predicated region
    $region46: #{tpu_custom_call.1} parent=1 // pred_check
      _
    $region47: #{tpu_custom_call.1} parent=1 // pred_check_branch
      %346 = sbr.rel (0) target = $region49
    $region48: #{tpu_custom_call.1} parent=1 // pred_region
      _
    $region49: #{tpu_custom_call.1} parent=1 // pred_fallthru
      _
    // Predicated region
    $region50: #{tpu_custom_call.1} parent=1 // pred_check
      _
    $region51: #{tpu_custom_call.1} parent=1 // pred_check_branch
      %348 = sbr.rel (0) target = $region53
    $region52: #{tpu_custom_call.1} parent=1 // pred_region
      _
    $region53: #{tpu_custom_call.1} parent=1 // pred_fallthru
      _
    %349 = vsyncpa [#allocation3], 1
    %350 = vsyncpa [#allocation5], 1
    %351 = vsyncpa [#allocation8], 1

</llo_original>
